<compile_context>
chip_gen: v7x
topology: tpu7x:2x2x1
jax: 0.10.0
libtpu: 0.0.40
codegen_flags: <defaults>
</compile_context>

<pallas_src>
import functools

import numpy as np

import jax
import jax.numpy as jnp
from jax import lax
from jax.experimental import pallas as pl
from jax.experimental.pallas import tpu as pltpu

EPS = 1e-5


def _conv_in_relu_kernel(x_ref, w_ref, m_ref, o_ref, *, H, W, B, Cin_p, K, pad,
                         compute_dtype):
    """One grid step = B batch elements.

    x_ref : (B, Cin_p, H*W)      flattened images, channels on sublanes (f32)
    w_ref : (Cout, K*K*Cin_p)    conv weight, columns ordered (kh, kw, ci), bf16
    m_ref : (K*K, H*W)           per-tap boundary-validity masks (f32)
    o_ref : (B, Cout, H*W)       output block (lane-dense, NCHW-ready)
    """
    HW = H * W
    KK = K * K
    masks = m_ref[...]                                 # hoisted: one load

    # --- im2col via lane rolls + boundary masks, kept in registers ----------
    img_patches = []
    for b in range(B):
        x = x_ref[b]                                   # (Cin_p, HW) f32
        taps = []
        for kh in range(K):
            for kw in range(K):
                t = kh * K + kw
                delta = (kh - pad) * W + (kw - pad)    # flat-index shift
                if delta == 0:
                    shifted = x
                else:
                    shifted = pltpu.roll(x, shift=(-delta) % HW, axis=1)
                # zero lanes whose source pixel lies outside the image
                taps.append(shifted * masks[t:t + 1, :])
        img_patches.append(jnp.concatenate(taps, axis=0))   # (KK*Cin_p, HW)

    patch = img_patches[0] if B == 1 else jnp.concatenate(img_patches, axis=1)
    patch = patch.astype(compute_dtype)                # single cast, MXU feed

    # --- single fused MXU matmul: (Cout, KKC) @ (KKC, B*HW) ------------------
    acc = jnp.dot(w_ref[...], patch,
                  preferred_element_type=jnp.float32)  # (Cout, B*HW) f32

    # --- InstanceNorm2d(affine=False) per image + ReLU -----------------------
    inv_hw = 1.0 / HW
    for b in range(B):
        a = acc[:, b * HW:(b + 1) * HW]                # lane-aligned slice
        mean = jnp.sum(a, axis=-1, keepdims=True) * inv_hw
        centered = a - mean
        var = jnp.sum(centered * centered, axis=-1, keepdims=True) * inv_hw
        y = centered * lax.rsqrt(var + EPS)
        o_ref[b] = jnp.maximum(y, 0.0).astype(o_ref.dtype)


def _pick_images_per_step(n, hw, max_lanes=512):
    """Largest divisor B of n with B*hw <= max_lanes and grid length >= 2."""
    best = 1
    for b in range(1, n + 1):
        if n % b:
            continue
        if b * hw > max_lanes:
            continue
        if n >= 2 and n // b < 2:
            continue   # keep >= 2 grid steps so both v7x TensorCores get work
        best = b
    return best


def conv_bn_act(x_nchw, weight_hwio, *, stride=1, padding=1,
                compute_dtype=jnp.bfloat16):
    """x_nchw: (N, Cin, H, W); weight_hwio: (K, K, Cin, Cout). Returns NCHW."""
    N, Cin, H, W = x_nchw.shape
    K, K2, Cin_w, Cout = weight_hwio.shape
    assert K == K2 and Cin_w == Cin
    assert stride == 1 and 2 * padding == K - 1, "only 'same' conv implemented"
    HW = H * W
    assert HW % 128 == 0, "H*W must be a multiple of 128 (lane-dense layout)"
    assert Cout % 8 == 0, "Cout must be a multiple of 8 (sublane-aligned store)"
    Cin_p = ((Cin + 7) // 8) * 8          # channels up to a sublane multiple

    B = _pick_images_per_step(N, HW)
    grid_len = N // B

    # ---- wrapper glue: no transpose, no spatial pad (folded into the kernel)
    x_flat = x_nchw.reshape(N, Cin, HW)   # metadata-only reshape
    if Cin_p != Cin:
        x_flat = jnp.pad(x_flat, ((0, 0), (0, Cin_p - Cin), (0, 0)))

    w = weight_hwio
    if Cin_p != Cin:
        w = jnp.pad(w, ((0, 0), (0, 0), (0, Cin_p - Cin), (0, 0)))
    # (K, K, Cin_p, Cout) -> (Cout, K*K*Cin_p), columns ordered (kh, kw, ci)
    w_mat = w.transpose(3, 0, 1, 2).reshape(Cout, K * K * Cin_p)
    w_mat = w_mat.astype(compute_dtype)

    # Per-tap boundary-validity masks (compile-time constants, host-side).
    hh = np.arange(H)[:, None]
    ww = np.arange(W)[None, :]
    mask_list = []
    for kh in range(K):
        for kw in range(K):
            dh, dw = kh - padding, kw - padding
            m = ((hh + dh >= 0) & (hh + dh < H) &
                 (ww + dw >= 0) & (ww + dw < W))
            mask_list.append(m.reshape(HW))
    masks = jnp.asarray(np.stack(mask_list).astype(np.float32))  # (K*K, HW)

    kernel = functools.partial(
        _conv_in_relu_kernel,
        H=H, W=W, B=B, Cin_p=Cin_p, K=K, pad=padding,
        compute_dtype=compute_dtype)

    cost = pl.CostEstimate(
        flops=int(2 * N * Cout * HW * K * K * Cin_p + 8 * N * Cout * HW),
        transcendentals=int(N * Cout),
        bytes_accessed=int(x_flat.size * 4 + N * Cout * HW * 4
                           + w_mat.size * 2 + masks.size * 4))

    out_flat = pl.pallas_call(
        kernel,
        out_shape=jax.ShapeDtypeStruct((N, Cout, HW), x_nchw.dtype),
        grid_spec=pltpu.PrefetchScalarGridSpec(
            num_scalar_prefetch=0,
            grid=(grid_len,),
            in_specs=[
                pl.BlockSpec((B, Cin_p, HW), lambda g: (g, 0, 0)),
                pl.BlockSpec((Cout, K * K * Cin_p), lambda g: (0, 0)),
                pl.BlockSpec((K * K, HW), lambda g: (0, 0)),
            ],
            out_specs=pl.BlockSpec((B, Cout, HW), lambda g: (g, 0, 0)),
        ),
        compiler_params=pltpu.CompilerParams(
            dimension_semantics=("parallel",)),
        cost_estimate=cost,
    )(x_flat, w_mat, masks)

    # (N, Cout, H*W) -> (N, Cout, H, W): metadata-only, already NCHW.
    return out_flat.reshape(N, Cout, H, W)


def _reference(x_nchw, weight_hwio):
    """Plain-JAX f32 reference: Conv2d -> InstanceNorm2d(affine=False) -> ReLU."""
    y = lax.conv_general_dilated(
        x_nchw, weight_hwio, window_strides=(1, 1), padding=((1, 1), (1, 1)),
        dimension_numbers=("NCHW", "HWIO", "NCHW"))
    mean = jnp.mean(y, axis=(2, 3), keepdims=True)
    var = jnp.mean((y - mean) ** 2, axis=(2, 3), keepdims=True)
    return jnp.maximum((y - mean) * lax.rsqrt(var + EPS), 0.0)


if __name__ == "__main__":
    key = jax.random.PRNGKey(0)
    kx, kw = jax.random.split(key)

    N, Cin, H, W = 2, 4, 16, 16
    Cout, K = 8, 3

    x = jax.random.normal(kx, (N, Cin, H, W), dtype=jnp.float32)
    fan_in = Cin * K * K
    weight = jax.random.normal(kw, (K, K, Cin, Cout), dtype=jnp.float32)
    weight = weight * (2.0 / fan_in) ** 0.5

    out = jax.block_until_ready(conv_bn_act(x, weight))
    assert out.shape == (N, Cout, H, W)

    # Compare against the reference run on the same bf16-quantized operands
    # the MXU sees (the kernel accumulates in f32).
    xq = x.astype(jnp.bfloat16).astype(jnp.float32)
    wq = weight.astype(jnp.bfloat16).astype(jnp.float32)
    ref = _reference(xq, wq)
    max_err = jnp.max(jnp.abs(out - ref))
    assert jnp.allclose(out, ref, atol=2e-3, rtol=2e-3), f"max abs err {max_err}"

    # Also exercise the lane-batched path (N=4 -> B=2 images/step, grid=2).
    x2 = jax.random.normal(jax.random.PRNGKey(1), (4, Cin, H, W),
                           dtype=jnp.float32)
    out2 = jax.block_until_ready(conv_bn_act(x2, weight))
    assert out2.shape == (4, Cout, H, W)
    ref2 = _reference(x2.astype(jnp.bfloat16).astype(jnp.float32), wq)
    max_err2 = jnp.max(jnp.abs(out2 - ref2))
    assert jnp.allclose(out2, ref2, atol=2e-3, rtol=2e-3), \
        f"max abs err {max_err2}"

    print("KERNEL_OK")
</pallas_src>

<mosaic_0001>
module attributes {stable_mosaic.version = 11 : i64} {
  func.func @_conv_in_relu_kernel(%arg0: i32, %arg1: memref<1x8x256xf32, #tpu.memory_space<vmem>>, %arg2: memref<8x72xbf16, #tpu.memory_space<vmem>>, %arg3: memref<9x256xf32, #tpu.memory_space<vmem>>, %arg4: memref<1x8x256xf32, #tpu.memory_space<vmem>>) attributes {dimension_semantics = [#tpu.dimension_semantics<parallel>], iteration_bounds = array<i64: 2>, scalar_prefetch = 0 : i64, scratch_operands = 0 : i64, tpu.core_type = #tpu.core_type<tc>, window_params = [{transform_indices = @transform_0, window_bounds = array<i64: 1, 8, 256>}, {pipeline_mode = #tpu.pipeline_mode<synchronous>, transform_indices = @transform_1, window_bounds = array<i64: 8, 72>}, {pipeline_mode = #tpu.pipeline_mode<synchronous>, transform_indices = @transform_2, window_bounds = array<i64: 9, 256>}, {transform_indices = @transform_3, window_bounds = array<i64: 1, 8, 256>}]} {
    %c0 = arith.constant 0 : index
    %c0_0 = arith.constant 0 : index
    %0 = vector.load %arg3[%c0, %c0_0] : memref<9x256xf32, #tpu.memory_space<vmem>>, vector<9x256xf32>
    %c0_1 = arith.constant 0 : index
    %c0_2 = arith.constant 0 : index
    %c0_3 = arith.constant 0 : index
    %1 = vector.load %arg1[%c0_1, %c0_2, %c0_3] : memref<1x8x256xf32, #tpu.memory_space<vmem>>, vector<1x8x256xf32>
    %2 = vector.shape_cast %1 : vector<1x8x256xf32> to vector<8x256xf32>
    %c17_i32 = arith.constant 17 : i32
    %3 = tpu.dynamic_rotate %2 by %c17_i32 dim 1 : vector<8x256xf32>, i32 -> vector<8x256xf32>
    %4 = vector.extract_strided_slice %0 {offsets = [0, 0], sizes = [1, 256], strides = [1, 1]} : vector<9x256xf32> to vector<1x256xf32>
    %5 = vector.broadcast %4 : vector<1x256xf32> to vector<8x256xf32>
    %6 = arith.mulf %3, %5 : vector<8x256xf32>
    %c16_i32 = arith.constant 16 : i32
    %7 = tpu.dynamic_rotate %2 by %c16_i32 dim 1 : vector<8x256xf32>, i32 -> vector<8x256xf32>
    %8 = vector.extract_strided_slice %0 {offsets = [1, 0], sizes = [1, 256], strides = [1, 1]} : vector<9x256xf32> to vector<1x256xf32>
    %9 = vector.broadcast %8 : vector<1x256xf32> to vector<8x256xf32>
    %10 = arith.mulf %7, %9 : vector<8x256xf32>
    %c15_i32 = arith.constant 15 : i32
    %11 = tpu.dynamic_rotate %2 by %c15_i32 dim 1 : vector<8x256xf32>, i32 -> vector<8x256xf32>
    %12 = vector.extract_strided_slice %0 {offsets = [2, 0], sizes = [1, 256], strides = [1, 1]} : vector<9x256xf32> to vector<1x256xf32>
    %13 = vector.broadcast %12 : vector<1x256xf32> to vector<8x256xf32>
    %14 = arith.mulf %11, %13 : vector<8x256xf32>
    %c1_i32 = arith.constant 1 : i32
    %15 = tpu.dynamic_rotate %2 by %c1_i32 dim 1 : vector<8x256xf32>, i32 -> vector<8x256xf32>
    %16 = vector.extract_strided_slice %0 {offsets = [3, 0], sizes = [1, 256], strides = [1, 1]} : vector<9x256xf32> to vector<1x256xf32>
    %17 = vector.broadcast %16 : vector<1x256xf32> to vector<8x256xf32>
    %18 = arith.mulf %15, %17 : vector<8x256xf32>
    %19 = vector.extract_strided_slice %0 {offsets = [4, 0], sizes = [1, 256], strides = [1, 1]} : vector<9x256xf32> to vector<1x256xf32>
    %20 = vector.broadcast %19 : vector<1x256xf32> to vector<8x256xf32>
    %21 = arith.mulf %2, %20 : vector<8x256xf32>
    %c255_i32 = arith.constant 255 : i32
    %22 = tpu.dynamic_rotate %2 by %c255_i32 dim 1 : vector<8x256xf32>, i32 -> vector<8x256xf32>
    %23 = vector.extract_strided_slice %0 {offsets = [5, 0], sizes = [1, 256], strides = [1, 1]} : vector<9x256xf32> to vector<1x256xf32>
    %24 = vector.broadcast %23 : vector<1x256xf32> to vector<8x256xf32>
    %25 = arith.mulf %22, %24 : vector<8x256xf32>
    %c241_i32 = arith.constant 241 : i32
    %26 = tpu.dynamic_rotate %2 by %c241_i32 dim 1 : vector<8x256xf32>, i32 -> vector<8x256xf32>
    %27 = vector.extract_strided_slice %0 {offsets = [6, 0], sizes = [1, 256], strides = [1, 1]} : vector<9x256xf32> to vector<1x256xf32>
    %28 = vector.broadcast %27 : vector<1x256xf32> to vector<8x256xf32>
    %29 = arith.mulf %26, %28 : vector<8x256xf32>
    %c240_i32 = arith.constant 240 : i32
    %30 = tpu.dynamic_rotate %2 by %c240_i32 dim 1 : vector<8x256xf32>, i32 -> vector<8x256xf32>
    %31 = vector.extract_strided_slice %0 {offsets = [7, 0], sizes = [1, 256], strides = [1, 1]} : vector<9x256xf32> to vector<1x256xf32>
    %32 = vector.broadcast %31 : vector<1x256xf32> to vector<8x256xf32>
    %33 = arith.mulf %30, %32 : vector<8x256xf32>
    %c239_i32 = arith.constant 239 : i32
    %34 = tpu.dynamic_rotate %2 by %c239_i32 dim 1 : vector<8x256xf32>, i32 -> vector<8x256xf32>
    %35 = vector.extract_strided_slice %0 {offsets = [8, 0], sizes = [1, 256], strides = [1, 1]} : vector<9x256xf32> to vector<1x256xf32>
    %36 = vector.broadcast %35 : vector<1x256xf32> to vector<8x256xf32>
    %37 = arith.mulf %34, %36 : vector<8x256xf32>
    %38 = tpu.concatenate %6, %10, %14, %18, %21, %25, %29, %33, %37 in 0 : vector<8x256xf32>, vector<8x256xf32>, vector<8x256xf32>, vector<8x256xf32>, vector<8x256xf32>, vector<8x256xf32>, vector<8x256xf32>, vector<8x256xf32>, vector<8x256xf32> -> vector<72x256xf32>
    %39 = arith.truncf %38 : vector<72x256xf32> to vector<72x256xbf16>
    %c0_4 = arith.constant 0 : index
    %c0_5 = arith.constant 0 : index
    %40 = vector.load %arg2[%c0_4, %c0_5] : memref<8x72xbf16, #tpu.memory_space<vmem>>, vector<8x72xbf16>
    %cst = arith.constant dense<0.000000e+00> : vector<8x256xf32>
    %41 = tpu.matmul %40, %39, %cst {dimension_numbers = #tpu.dot_dimension_numbers<[1], [0], [0], [1], [0, 0, 1, 1], [], []>} : vector<8x72xbf16>, vector<72x256xbf16>, vector<8x256xf32> -> vector<8x256xf32>
    %cst_6 = arith.constant dense<0.000000e+00> : vector<8xf32>
    %42 = vector.multi_reduction <add>, %41, %cst_6 [1] : vector<8x256xf32> to vector<8xf32>
    %43 = vector.shape_cast %42 : vector<8xf32> to vector<8x1xf32>
    %cst_7 = arith.constant 3.906250e-03 : f32
    %44 = vector.broadcast %cst_7 : f32 to vector<8x1xf32>
    %45 = arith.mulf %43, %44 : vector<8x1xf32>
    %46 = vector.broadcast %45 : vector<8x1xf32> to vector<8x256xf32>
    %47 = arith.subf %41, %46 : vector<8x256xf32>
    %48 = arith.mulf %47, %47 : vector<8x256xf32>
    %cst_8 = arith.constant dense<0.000000e+00> : vector<8xf32>
    %49 = vector.multi_reduction <add>, %48, %cst_8 [1] : vector<8x256xf32> to vector<8xf32>
    %50 = vector.shape_cast %49 : vector<8xf32> to vector<8x1xf32>
    %cst_9 = arith.constant 3.906250e-03 : f32
    %51 = vector.broadcast %cst_9 : f32 to vector<8x1xf32>
    %52 = arith.mulf %50, %51 : vector<8x1xf32>
    %cst_10 = arith.constant 9.99999974E-6 : f32
    %53 = vector.broadcast %cst_10 : f32 to vector<8x1xf32>
    %54 = arith.addf %52, %53 : vector<8x1xf32>
    %55 = math.rsqrt %54 : vector<8x1xf32>
    %56 = vector.broadcast %55 : vector<8x1xf32> to vector<8x256xf32>
    %57 = arith.mulf %47, %56 : vector<8x256xf32>
    %cst_11 = arith.constant 0.000000e+00 : f32
    %58 = vector.broadcast %cst_11 : f32 to vector<8x256xf32>
    %59 = arith.maximumf %57, %58 : vector<8x256xf32>
    %c0_12 = arith.constant 0 : index
    %c0_13 = arith.constant 0 : index
    %c0_14 = arith.constant 0 : index
    %60 = vector.load %arg4[%c0_12, %c0_13, %c0_14] : memref<1x8x256xf32, #tpu.memory_space<vmem>>, vector<1x8x256xf32>
    %61 = vector.shape_cast %60 : vector<1x8x256xf32> to vector<8x256xf32>
    %62 = vector.shape_cast %59 : vector<8x256xf32> to vector<1x8x256xf32>
    tpu.vector_store %arg4[%c0_12, %c0_13, %c0_14], %62 {strides = array<i32>} : memref<1x8x256xf32, #tpu.memory_space<vmem>>, vector<1x8x256xf32>,
    return
  }
  func.func @transform_0(%arg0: i32) -> (i32, i32, i32) {
    %c0_i32 = arith.constant 0 : i32
    %c0_i32_0 = arith.constant 0 : i32
    %c0_i32_1 = arith.constant 0 : i32
    return %arg0, %c0_i32, %c0_i32_0 : i32, i32, i32
  }
  func.func @transform_1(%arg0: i32) -> (i32, i32) {
    %c0_i32 = arith.constant 0 : i32
    %c0_i32_0 = arith.constant 0 : i32
    %c0_i32_1 = arith.constant 0 : i32
    return %c0_i32, %c0_i32_0 : i32, i32
  }
  func.func @transform_2(%arg0: i32) -> (i32, i32) {
    %c0_i32 = arith.constant 0 : i32
    %c0_i32_0 = arith.constant 0 : i32
    %c0_i32_1 = arith.constant 0 : i32
    return %c0_i32, %c0_i32_0 : i32, i32
  }
  func.func @transform_3(%arg0: i32) -> (i32, i32, i32) {
    %c0_i32 = arith.constant 0 : i32
    %c0_i32_0 = arith.constant 0 : i32
    %c0_i32_1 = arith.constant 0 : i32
    return %arg0, %c0_i32, %c0_i32_0 : i32, i32, i32
  }
}

</mosaic_0001>

<llo_original>
// kernel: tpu_custom_call.1
$region0: #{tpu_custom_call.1}
  #allocation0 [shape = 'u32[]', space=smem, size = 0x4, offset = 0x4, fixed_abs, tag = 'smem constant byte address 0x4 - core index']
  #allocation1 [shape = 'u32[144,128]{1,0:T(1,128)}', space=vmem, size = 0x12000, scoped, tag = 'internal scratch']
  %s0 = inlined_call_operand.hbm [shape: f32[2,8,256], index: 0, kind: input, shape index: {}]
  %s1 = inlined_call_operand.hbm [shape: bf16[8,72], index: 1, kind: input, shape index: {}]
  %s2 = inlined_call_operand.hbm [shape: f32[9,256], index: 2, kind: input, shape index: {}]
  %s3 = inlined_call_operand.hbm [shape: f32[2,8,256], index: 3, kind: output, shape index: {}]
  %s4 = sld [smem:[#allocation0]]
  $region57: #{tpu_custom_call.1} parent=0
    _
  %s6 = ssub.s32 1, %s4
  %s7 = scalar_select 0, %s6, %s4
  $region1: #{tpu_custom_call.1} parent=0
    #allocation2 [shape = 'u8[16384]{0}', space=vmem, size = 0x4000, scoped, tag = 'input window, operand 0']
    #allocation3 [shape = 's32[2]{0}', space=sflag, size = 0x8, scoped, tag = 'scoped memory for tpu_custom_call.1']
    #allocation4 [shape = 's32[2]{0}', space=sflag, size = 0x8, scoped, tag = 'scoped memory for tpu_custom_call.1']
    #allocation5 [shape = 'u8[2048]{0}', space=vmem, size = 0x800, scoped, tag = 'input window, operand 1, single buffered']
    #allocation6 [shape = 's32[1]{0}', space=sflag, size = 0x4, scoped, tag = 'scoped memory for tpu_custom_call.1']
    #allocation7 [shape = 'u8[16384]{0}', space=vmem, size = 0x4000, scoped, tag = 'input window, operand 2, single buffered']
    #allocation8 [shape = 'u8[16384]{0}', space=vmem, size = 0x4000, scoped, tag = 'output window, operand 0']
    %8 = vsyncpa [#allocation3], 0
    %s9 = scalar_lea.sflag [#allocation3], 1
    %10 = vsyncpa %s9, 0
    %11 = vsyncpa [#allocation6], 0
    %12 = vsyncpa [#allocation4], 0
    %s13 = scalar_lea.sflag [#allocation4], 1
    %14 = vsyncpa %s13, 0
    loop: start=0, step=1, limit=4
    $region2: #{tpu_custom_call.1} parent=1 // loop_pre_header
      _
    $region3: #{tpu_custom_call.1} parent=1 // loop_header
      %s16 = sphi 0, %s20
      %p17 = scmp.ge.s32.totalorder %s16, 4
      %s26 = sphi 0, %s28
      %s29 = sphi 0, %s26
      %s30 = sphi 0, %s29
      %s46 = sphi 0, %s30
      %s50 = sphi 0, %s50
      %s52 = sphi 0, %s50
      %s53 = sphi 0, %s52
      %s67 = sphi 0, %s53
      %s71 = sphi 0, %s71
      %s73 = sphi 0, %s71
      %s74 = sphi 0, %s73
      %s88 = sphi 0, %s74
      %s94 = sphi 0, %s96
      %s97 = sphi 0, %s94
      %s98 = sphi 0, %s97
      %s114 = sphi 0, %s98
    $region4: #{tpu_custom_call.1} parent=1 // loop_header_branch
      %19 = sbr.rel (%p17) target = $region8
    $region5: #{tpu_custom_call.1} parent=1 // loop_body
      %s21 = ssub.s32 %s16, 1
      %s22 = ssub.s32 %s16, 2
      %s23 = sadd.s32 %s16, 1
      %s24 = ssub.s32 %s16, %s23
      %p25 = scmp.eq.s32.totalorder %s24, 0
      %s27 = sadd.s32 %s26, 1
      %s28 = scalar_select %p25, %s26, %s27
      %p31 = pneg %p25
      %p32 = scmp.eq.s32.totalorder %s16, 1
      %p33 = por %p31, %p32
      %p34 = scmp.ne.s32.totalorder %s26, %s29
      %p35 = scmp.eq.s32.totalorder %s16, 0
      %p36 = por %p34, %p35
      %p37 = scmp.ne.s32.totalorder %s26, %s29
      %p38 = scmp.eq.s32.totalorder %s21, 1
      %p39 = por %p37, %p38
      %p40 = scmp.ne.s32.totalorder %s29, %s30
      %p41 = scmp.eq.s32.totalorder %s21, 0
      %p42 = por %p40, %p41
      %p43 = scmp.ne.s32.totalorder %s29, %s30
      %p44 = scmp.eq.s32.totalorder %s22, 1
      %p45 = por %p43, %p44
      %p47 = scmp.ne.s32.totalorder %s30, %s46
      %p48 = scmp.eq.s32.totalorder %s22, 0
      %p49 = por %p47, %p48
      %s51 = sadd.s32 %s50, 1
      %p54 = scmp.eq.s32.totalorder %s16, 1
      %p55 = scmp.ne.s32.totalorder %s50, %s52
      %p56 = scmp.eq.s32.totalorder %s16, 0
      %p57 = por %p55, %p56
      %p58 = scmp.ne.s32.totalorder %s50, %s52
      %p59 = scmp.eq.s32.totalorder %s21, 1
      %p60 = por %p58, %p59
      %p61 = scmp.ne.s32.totalorder %s52, %s53
      %p62 = scmp.eq.s32.totalorder %s21, 0
      %p63 = por %p61, %p62
      %p64 = scmp.ne.s32.totalorder %s52, %s53
      %p65 = scmp.eq.s32.totalorder %s22, 1
      %p66 = por %p64, %p65
      %p68 = scmp.ne.s32.totalorder %s53, %s67
      %p69 = scmp.eq.s32.totalorder %s22, 0
      %p70 = por %p68, %p69
      %s72 = sadd.s32 %s71, 1
      %p75 = scmp.eq.s32.totalorder %s16, 1
      %p76 = scmp.ne.s32.totalorder %s71, %s73
      %p77 = scmp.eq.s32.totalorder %s16, 0
      %p78 = por %p76, %p77
      %p79 = scmp.ne.s32.totalorder %s71, %s73
      %p80 = scmp.eq.s32.totalorder %s21, 1
      %p81 = por %p79, %p80
      %p82 = scmp.ne.s32.totalorder %s73, %s74
      %p83 = scmp.eq.s32.totalorder %s21, 0
      %p84 = por %p82, %p83
      %p85 = scmp.ne.s32.totalorder %s73, %s74
      %p86 = scmp.eq.s32.totalorder %s22, 1
      %p87 = por %p85, %p86
      %p89 = scmp.ne.s32.totalorder %s74, %s88
      %p90 = scmp.eq.s32.totalorder %s22, 0
      %p91 = por %p89, %p90
      %s92 = ssub.s32 %s16, %s23
      %p93 = scmp.eq.s32.totalorder %s92, 0
      %s95 = sadd.s32 %s94, 1
      %s96 = scalar_select %p93, %s94, %s95
      %p99 = pneg %p93
      %p100 = scmp.eq.s32.totalorder %s16, 1
      %p101 = por %p99, %p100
      %p102 = scmp.ne.s32.totalorder %s94, %s97
      %p103 = scmp.eq.s32.totalorder %s16, 0
      %p104 = por %p102, %p103
      %p105 = scmp.ne.s32.totalorder %s94, %s97
      %p106 = scmp.eq.s32.totalorder %s21, 1
      %p107 = por %p105, %p106
      %p108 = scmp.ne.s32.totalorder %s97, %s98
      %p109 = scmp.eq.s32.totalorder %s21, 0
      %p110 = por %p108, %p109
      %p111 = scmp.ne.s32.totalorder %s97, %s98
      %p112 = scmp.eq.s32.totalorder %s22, 1
      %p113 = por %p111, %p112
      %p115 = scmp.ne.s32.totalorder %s98, %s114
      %p116 = scmp.eq.s32.totalorder %s22, 0
      %p117 = por %p115, %p116
      %p118 = scmp.le.s32.totalorder 1, %s16
      %p119 = scmp.lt.s32.totalorder %s16, 3
      %p120 = pnand %p118, %p119
      %p121 = pneg %p120
      // Predicated region
      $region9: #{tpu_custom_call.1} parent=5 // pred_check
        _
      $region10: #{tpu_custom_call.1} parent=5 // pred_check_branch
        %123 = sbr.rel (%p120) target = $region12
      $region11: #{tpu_custom_call.1} parent=5 // pred_region
        %s124 = ssub.s32 %s16, 1
        // Predicated region
        $region13: #{tpu_custom_call.1} parent=11 // pred_check
          %p125 = pneg %p63
        $region14: #{tpu_custom_call.1} parent=11 // pred_check_branch
          %127 = sbr.rel (%p125) target = $region16
        $region15: #{tpu_custom_call.1} parent=11 // pred_region
          %s129 = ssub.s32 64, 64
          %130 = vsyncadd [#allocation6], %s129
          %s132 = sshll.u32 [#allocation5], 4
          %s133 = int_to_ptr.vmem [resolvable:$true] %s132
          %135 = dma.hbm_to_vmem [thread:$0]  %s1, 64, %s133, [#allocation6]
        $region16: #{tpu_custom_call.1} parent=11 // pred_fallthru
          _
        // Predicated region
        $region17: #{tpu_custom_call.1} parent=11 // pred_check
          %p136 = pneg %p84
        $region18: #{tpu_custom_call.1} parent=11 // pred_check_branch
          %138 = sbr.rel (%p136) target = $region20
        $region19: #{tpu_custom_call.1} parent=11 // pred_region
          %s140 = ssub.s32 512, 512
          %141 = vsyncadd [#allocation6], %s140
          %s142 = sshll.u32 [#allocation7], 4
          %s143 = int_to_ptr.vmem [resolvable:$true] %s142
          %148 = dma.hbm_to_vmem [thread:$0]  %s2, 512, %s143, [#allocation6], 256, 256, 16
        $region20: #{tpu_custom_call.1} parent=11 // pred_fallthru
          _
      $region12: #{tpu_custom_call.1} parent=5 // pred_fallthru
        _
      %p149 = scmp.lt.s32.totalorder %s16, 2
      // Predicated region
      $region21: #{tpu_custom_call.1} parent=5 // pred_check
        %p150 = pneg %p149
      $region22: #{tpu_custom_call.1} parent=5 // pred_check_branch
        %152 = sbr.rel (%p150) target = $region24
      $region23: #{tpu_custom_call.1} parent=5 // pred_region
        // Predicated region
        $region25: #{tpu_custom_call.1} parent=23 // pred_check
          %p153 = pneg %p36
        $region26: #{tpu_custom_call.1} parent=23 // pred_check_branch
          %155 = sbr.rel (%p153) target = $region28
        $region27: #{tpu_custom_call.1} parent=23 // pred_region
          %s156 = sand.u32 %s26, 1
          %s157 = scalar_lea.sflag [#allocation3], %s156
          %s158 = sand.u32 %s26, 1
          %s159 = smul.addr %s158, 16
          %s160 = scalar_lea.vmem [#allocation2], %s159
          %s162 = ssub.s32 256, 256
          %163 = vsyncadd %s157, %s162
          %s164 = smul.addr %s16, 2
          %s165 = smul.addr %s164, 128
          %s166 = scalar_lea.hbm %s0, %s165
          %s168 = sshll.u32 %s160, 4
          %s169 = int_to_ptr.vmem [resolvable:$true] %s168
          %171 = dma.hbm_to_vmem [thread:$0]  %s166, 256, %s169, %s157
        $region28: #{tpu_custom_call.1} parent=23 // pred_fallthru
          _
      $region24: #{tpu_custom_call.1} parent=5 // pred_fallthru
        _
      %p172 = scmp.le.s32.totalorder 1, %s16
      %p173 = scmp.lt.s32.totalorder %s16, 3
      %p174 = pnand %p172, %p173
      %p175 = pneg %p174
      // Predicated region
      $region29: #{tpu_custom_call.1} parent=5 // pred_check
        _
      $region30: #{tpu_custom_call.1} parent=5 // pred_check_branch
        %177 = sbr.rel (%p174) target = $region32
      $region31: #{tpu_custom_call.1} parent=5 // pred_region
        %s178 = ssub.s32 %s16, 1
        %s179 = sand.u32 %s29, 1
        %s180 = scalar_lea.sflag [#allocation3], %s179
        %s181 = sand.u32 %s29, 1
        %s182 = smul.addr %s181, 16
        %s183 = scalar_lea.vmem [#allocation2], %s182
        // Predicated region
        $region33: #{tpu_custom_call.1} parent=31 // pred_check
          %p184 = pneg %p42
        $region34: #{tpu_custom_call.1} parent=31 // pred_check_branch
          %186 = sbr.rel (%p184) target = $region36
        $region35: #{tpu_custom_call.1} parent=31 // pred_region
          %187 = dma.done %s180, 256
        $region36: #{tpu_custom_call.1} parent=31 // pred_fallthru
          _
        // Predicated region
        $region37: #{tpu_custom_call.1} parent=31 // pred_check
          %p188 = pneg %p63
        $region38: #{tpu_custom_call.1} parent=31 // pred_check_branch
          %190 = sbr.rel (%p188) target = $region40
        $region39: #{tpu_custom_call.1} parent=31 // pred_region
          %191 = dma.done [#allocation6], 64
        $region40: #{tpu_custom_call.1} parent=31 // pred_fallthru
          _
        // Predicated region
        $region41: #{tpu_custom_call.1} parent=31 // pred_check
          %p192 = pneg %p84
        $region42: #{tpu_custom_call.1} parent=31 // pred_check_branch
          %194 = sbr.rel (%p192) target = $region44
        $region43: #{tpu_custom_call.1} parent=31 // pred_region
          %195 = dma.done [#allocation6], 512
        $region44: #{tpu_custom_call.1} parent=31 // pred_fallthru
          _
        %s196 = sand.u32 %s29, 1
        %s197 = scalar_lea.sflag [#allocation3], %s196
        %s198 = sand.u32 %s29, 1
        %s199 = smul.addr %s198, 16
        %s200 = scalar_lea.vmem [#allocation2], %s199
        %p201 = pneg %p42
        %p202 = pneg %p39
        %p203 = pneg %p63
        %p204 = pneg %p60
        %p205 = pneg %p84
        %p206 = pneg %p81
        %p207 = pneg %p110
        %p208 = pneg %p107
        %s209 = sand.u32 %s97, 1
        %s210 = scalar_lea.sflag [#allocation4], %s209
        %s211 = sand.u32 %s97, 1
        %s212 = smul.addr %s211, 16
        %s213 = scalar_lea.vmem [#allocation8], %s212
        %v215 = vld [vmem:[#allocation7] sm:$0xff]
        %v216 = vld [vmem:[#allocation7 + $0x8] sm:$0xff]
        %v217 = vld [vmem:[#allocation7 + $0x10] sm:$0x1]
        %v218 = vld [vmem:[#allocation7 + $0x18] sm:$0x1]
        %v219 = vld [vmem:[%s183] sm:$0xff]
        %v220 = vld [vmem:[%s183 + $0x8] sm:$0xff]
        %221 = vrot.lane.b32.xlu0 %v219, 17
        %v222 = vpop.permute.xlu0 %221
        %223 = vrot.lane.b32.xlu0 %v220, 17
        %v224 = vpop.permute.xlu0 %223
        %v225 = vlaneseq
        %v226 = vand.u32 %v225, 127
        %vm227 = vcmp.lt.s32.totalorder %v226, 17
        %v228 = vsel %vm227, %v222, %v224
        %v229 = vsel %vm227, %v224, %v222
        %v230 = vlaneseq
        %v231 = vshrl.u32 %v230, 7
        %v232 = vsub.s32 0, %v231
        %v233 = vrot.slane %v215, %v232
        %v234 = vlaneseq
        %v235 = vshrl.u32 %v234, 7
        %v236 = vsub.s32 0, %v235
        %v237 = vrot.slane %v216, %v236
        %v238 = vmul.f32 %v229, %v233
        %v239 = vmul.f32 %v228, %v237
        %240 = vrot.lane.b32.xlu0 %v219, 16
        %v241 = vpop.permute.xlu0 %240
        %242 = vrot.lane.b32.xlu0 %v220, 16
        %v243 = vpop.permute.xlu0 %242
        %vm244 = vcmp.lt.s32.totalorder %v226, 16
        %v245 = vsel %vm244, %v241, %v243
        %v246 = vsel %vm244, %v243, %v241
        %v247 = vlaneseq
        %v248 = vshrl.u32 %v247, 7
        %v249 = vsub.s32 1, %v248
        %v250 = vrot.slane %v215, %v249
        %v251 = vlaneseq
        %v252 = vshrl.u32 %v251, 7
        %v253 = vsub.s32 1, %v252
        %v254 = vrot.slane %v216, %v253
        %v255 = vmul.f32 %v246, %v250
        %v256 = vmul.f32 %v245, %v254
        %257 = vrot.lane.b32.xlu0 %v219, 15
        %v258 = vpop.permute.xlu0 %257
        %259 = vrot.lane.b32.xlu0 %v220, 15
        %v260 = vpop.permute.xlu0 %259
        %vm261 = vcmp.lt.s32.totalorder %v226, 15
        %v262 = vsel %vm261, %v258, %v260
        %v263 = vsel %vm261, %v260, %v258
        %v264 = vlaneseq
        %v265 = vshrl.u32 %v264, 7
        %v266 = vsub.s32 2, %v265
        %v267 = vrot.slane %v215, %v266
        %v268 = vlaneseq
        %v269 = vshrl.u32 %v268, 7
        %v270 = vsub.s32 2, %v269
        %v271 = vrot.slane %v216, %v270
        %v272 = vmul.f32 %v263, %v267
        %v273 = vmul.f32 %v262, %v271
        %274 = vrot.lane.b32.xlu0 %v219, 1
        %v275 = vpop.permute.xlu0 %274
        %276 = vrot.lane.b32.xlu0 %v220, 1
        %v277 = vpop.permute.xlu0 %276
        %vm278 = vcmp.lt.s32.totalorder %v226, 1
        %v279 = vsel %vm278, %v275, %v277
        %v280 = vsel %vm278, %v277, %v275
        %v281 = vlaneseq
        %v282 = vshrl.u32 %v281, 7
        %v283 = vsub.s32 3, %v282
        %v284 = vrot.slane %v215, %v283
        %v285 = vlaneseq
        %v286 = vshrl.u32 %v285, 7
        %v287 = vsub.s32 3, %v286
        %v288 = vrot.slane %v216, %v287
        %v289 = vmul.f32 %v280, %v284
        %v290 = vmul.f32 %v279, %v288
        %v291 = vlaneseq
        %v292 = vshrl.u32 %v291, 7
        %v293 = vsub.s32 4, %v292
        %v294 = vrot.slane %v215, %v293
        %v295 = vlaneseq
        %v296 = vshrl.u32 %v295, 7
        %v297 = vsub.s32 4, %v296
        %v298 = vrot.slane %v216, %v297
        %v299 = vmul.f32 %v219, %v294
        %v300 = vmul.f32 %v220, %v298
        %301 = vrot.lane.b32.xlu0 %v219, 127
        %v302 = vpop.permute.xlu0 %301
        %303 = vrot.lane.b32.xlu0 %v220, 127
        %v304 = vpop.permute.xlu0 %303
        %vm305 = vcmp.lt.s32.totalorder %v226, 127
        %v306 = vsel %vm305, %v302, %v304
        %v307 = vsel %vm305, %v304, %v302
        %v308 = vlaneseq
        %v309 = vshrl.u32 %v308, 7
        %v310 = vsub.s32 5, %v309
        %v311 = vrot.slane %v215, %v310
        %v312 = vlaneseq
        %v313 = vshrl.u32 %v312, 7
        %v314 = vsub.s32 5, %v313
        %v315 = vrot.slane %v216, %v314
        %v316 = vmul.f32 %v306, %v311
        %v317 = vmul.f32 %v307, %v315
        %318 = vrot.lane.b32.xlu0 %v219, 113
        %v319 = vpop.permute.xlu0 %318
        %320 = vrot.lane.b32.xlu0 %v220, 113
        %v321 = vpop.permute.xlu0 %320
        %vm322 = vcmp.lt.s32.totalorder %v226, 113
        %v323 = vsel %vm322, %v319, %v321
        %v324 = vsel %vm322, %v321, %v319
        %v325 = vlaneseq
        %v326 = vshrl.u32 %v325, 7
        %v327 = vsub.s32 6, %v326
        %v328 = vrot.slane %v215, %v327
        %v329 = vlaneseq
        %v330 = vshrl.u32 %v329, 7
        %v331 = vsub.s32 6, %v330
        %v332 = vrot.slane %v216, %v331
        %v333 = vmul.f32 %v323, %v328
        %v334 = vmul.f32 %v324, %v332
        %335 = vrot.lane.b32.xlu0 %v219, 112
        %v336 = vpop.permute.xlu0 %335
        %337 = vrot.lane.b32.xlu0 %v220, 112
        %v338 = vpop.permute.xlu0 %337
        %vm339 = vcmp.lt.s32.totalorder %v226, 112
        %v340 = vsel %vm339, %v336, %v338
        %v341 = vsel %vm339, %v338, %v336
        %v342 = vlaneseq
        %v343 = vshrl.u32 %v342, 7
        %v344 = vsub.s32 7, %v343
        %v345 = vrot.slane %v215, %v344
        %v346 = vlaneseq
        %v347 = vshrl.u32 %v346, 7
        %v348 = vsub.s32 7, %v347
        %v349 = vrot.slane %v216, %v348
        %v350 = vmul.f32 %v340, %v345
        %v351 = vmul.f32 %v341, %v349
        %352 = vrot.lane.b32.xlu0 %v219, 111
        %v353 = vpop.permute.xlu0 %352
        %354 = vrot.lane.b32.xlu0 %v220, 111
        %v355 = vpop.permute.xlu0 %354
        %vm356 = vcmp.lt.s32.totalorder %v226, 111
        %v357 = vsel %vm356, %v353, %v355
        %v358 = vsel %vm356, %v355, %v353
        %v359 = vlaneseq
        %v360 = vshrl.u32 %v359, 7
        %v361 = vsub.s32 0, %v360
        %v362 = vrot.slane %v217, %v361
        %v363 = vlaneseq
        %v364 = vshrl.u32 %v363, 7
        %v365 = vsub.s32 0, %v364
        %v366 = vrot.slane %v218, %v365
        %v367 = vmul.f32 %v357, %v362
        %v368 = vmul.f32 %v358, %v366
        %v369 = vpack.c.bf16 %v255, %v238
        %v370 = vpack.c.bf16 %v256, %v239
        %v371 = vpack.c.bf16 %v289, %v272
        %v372 = vpack.c.bf16 %v290, %v273
        %v373 = vpack.c.bf16 %v316, %v299
        %v374 = vpack.c.bf16 %v317, %v300
        %v375 = vpack.c.bf16 %v350, %v333
        %v376 = vpack.c.bf16 %v351, %v334
        %v377 = vpack.c.bf16 %v367, %v367
        %v378 = vpack.c.bf16 %v368, %v368
        %v379 = vld [vmem:[#allocation5] sm:$0xf]
        %vm380 = vcmask 588800
        %v382 = vsel %vm380, %v379, 0
        %vm384 = vcmask 1043456
        %v386 = vsel %vm384, %v377, 0
        %v389 = vsel %vm384, %v378, 0
        %391 = vmatprep.subr.bf16.mxu0 %v370
        %392 = vmatpush1.bf16.msra.mxu0 %v369
        %393 = vmatprep.subr.bf16.mxu0 %v372
        %394 = vmatpush1.bf16.msra.mxu0 %v371
        %395 = vmatprep.subr.bf16.mxu0 %v374
        %396 = vmatpush1.bf16.msra.mxu0 %v373
        %397 = vmatprep.subr.bf16.mxu0 %v376
        %398 = vmatpush1.bf16.msra.mxu0 %v375
        %399 = vmatprep.subr.bf16.mxu0 %v389
        %400 = vmatpush1.bf16.msra.mxu0 %v386
        %401 = vmatprep.subr.bf16.mxu0 0
        %402 = vmatpush1.bf16.msra.mxu0 0
        %403 = vmatprep.subr.bf16.mxu0 0
        %404 = vmatpush1.bf16.msra.mxu0 0
        %405 = vmatprep.subr.bf16.mxu0 0
        %406 = vmatpush1.bf16.msra.mxu0 0
        %407 = vmatprep.subr.bf16.mxu0 0
        %408 = vmatpush1.bf16.msra.mxu0 0
        %409 = vmatprep.subr.bf16.mxu0 0
        %410 = vmatpush1.bf16.msra.mxu0 0
        %411 = vmatprep.subr.bf16.mxu0 0
        %412 = vmatpush1.bf16.msra.mxu0 0
        %413 = vmatprep.subr.bf16.mxu0 0
        %414 = vmatpush1.bf16.msra.mxu0 0
        %415 = vmatprep.subr.bf16.mxu0 0
        %416 = vmatpush1.bf16.msra.mxu0 0
        %417 = vmatprep.subr.bf16.mxu0 0
        %418 = vmatpush1.bf16.msra.mxu0 0
        %419 = vmatprep.subr.bf16.mxu0 0
        %420 = vmatpush1.bf16.msra.mxu0 0
        %421 = vmatprep.subr.bf16.mxu0 0
        %422 = vmatpush1.bf16.msra.mxu0 0
        %423 = vmatprep.mubr.bf16.mxu0 0
        %424 = vmatmul.mubr.bf16.gmra.mrb[0].mxu0 %v382
        %v425 = vpop.f32.mrb[0].mxu0
        %v426 = vadd.f32 0.0, %v425
        %v427 = vpop.f32.mrb[0].mxu0
        %v428 = vadd.f32 0.0, %v427
        %v429 = vpop.f32.mrb[0].mxu0
        %v430 = vpop.f32.mrb[0].mxu0
        %431 = vdwg.mxu0
        %v432 = vadd.f32 %v426, %v428
        %433 = vadd.xlane.f32.xlu0 %v432
        %v434 = vpop.xlane.xlu0 %433
        %v435 = vmul.f32 %v434, 0.00390625
        %v436 = vsub.f32 %v426, %v435
        %v437 = vsub.f32 %v428, %v435
        %v438 = vmul.f32 %v436, %v436
        %v439 = vmul.f32 %v437, %v437
        %v440 = vadd.f32 %v438, %v439
        %441 = vadd.xlane.f32.xlu0 %v440
        %v442 = vpop.xlane.xlu0 %441
        %v443 = vmul.f32 %v442, 0.00390625
        %v444 = vadd.f32 %v443, 1e-05
        %v445 = vrsqrt.pop %v444
        %v446 = vmul.f32 %v436, %v445
        %v447 = vmul.f32 %v437, %v445
        %v448 = vmax.f32 %v446, 0.0
        %v449 = vmax.f32 %v447, 0.0
        %450 = vst [vmem:[%s213] sm:$0xff] %v448
        %451 = vst [vmem:[%s213 + $0x8] sm:$0xff] %v449
        %s452 = sand.u32 %s97, 1
        %s453 = scalar_lea.sflag [#allocation4], %s452
        %s454 = sand.u32 %s97, 1
        %s455 = smul.addr %s454, 16
        %s456 = scalar_lea.vmem [#allocation8], %s455
        // Predicated region
        $region45: #{tpu_custom_call.1} parent=31 // pred_check
          %p457 = pneg %p107
        $region46: #{tpu_custom_call.1} parent=31 // pred_check_branch
          %459 = sbr.rel (%p457) target = $region48
        $region47: #{tpu_custom_call.1} parent=31 // pred_region
          %s461 = ssub.s32 256, 256
          %462 = vsyncadd %s453, %s461
          %s463 = smul.addr %s21, 2
          %s464 = smul.addr %s463, 128
          %s465 = scalar_lea.hbm %s3, %s464
          %s467 = sshll.u32 %s456, 4
          %s468 = int_to_ptr.vmem [resolvable:$true] %s467
          %470 = dma.vmem_to_hbm [thread:$0]  %s468, 256, %s465, %s453
        $region48: #{tpu_custom_call.1} parent=31 // pred_fallthru
          _
      $region32: #{tpu_custom_call.1} parent=5 // pred_fallthru
        _
      %p471 = scmp.le.s32.totalorder 2, %s16
      // Predicated region
      $region49: #{tpu_custom_call.1} parent=5 // pred_check
        %p472 = pneg %p471
      $region50: #{tpu_custom_call.1} parent=5 // pred_check_branch
        %474 = sbr.rel (%p472) target = $region52
      $region51: #{tpu_custom_call.1} parent=5 // pred_region
        %s475 = ssub.s32 %s16, 2
        // Predicated region
        $region53: #{tpu_custom_call.1} parent=51 // pred_check
          %p476 = pneg %p113
        $region54: #{tpu_custom_call.1} parent=51 // pred_check_branch
          %478 = sbr.rel (%p476) target = $region56
        $region55: #{tpu_custom_call.1} parent=51 // pred_region
          %s479 = sand.u32 %s98, 1
          %s480 = scalar_lea.sflag [#allocation4], %s479
          %s481 = sand.u32 %s98, 1
          %s482 = smul.addr %s481, 16
          %s483 = scalar_lea.vmem [#allocation8], %s482
          %484 = dma.done %s480, 256
        $region56: #{tpu_custom_call.1} parent=51 // pred_fallthru
          _
      $region52: #{tpu_custom_call.1} parent=5 // pred_fallthru
        _
    $region6: #{tpu_custom_call.1} parent=1 // loop_footer
      %s20 = sadd.s32 1, %s16
    $region7: #{tpu_custom_call.1} parent=1 // loop_footer_branch
      %15 = sbr.rel target = $region3
    $region8: #{tpu_custom_call.1} parent=1 // loop_exit
      _
    %485 = vsyncpa [#allocation3], 1
    %s486 = scalar_lea.sflag [#allocation3], 1
    %487 = vsyncpa %s486, 1
    %488 = vsyncpa [#allocation6], 1
    %489 = vsyncpa [#allocation4], 1
    %s490 = scalar_lea.sflag [#allocation4], 1
    %491 = vsyncpa %s490, 1

</llo_original>
